<compile_context>
chip_gen: v6e
topology: v6e:2x2x1
jax: 0.10.0
libtpu: 0.0.40
codegen_flags: <defaults>
</compile_context>

<pallas_src>
import functools

import jax
import jax.numpy as jnp
import numpy as np
from jax.experimental import pallas as pl
from jax.experimental.pallas import tpu as pltpu


def _round_up(x, m):
    return (x + m - 1) // m * m


def _row_lse_kernel(scores_ref, lse_ref, m_ref, l_ref, *, ragged, v_total, tv):
    """Online (flash-style) logsumexp over vocab tiles for one batch row."""
    v = pl.program_id(1)
    nv = pl.num_programs(1)

    @pl.when(v == 0)
    def _():
        m_ref[...] = jnp.full_like(m_ref, -jnp.inf)
        l_ref[...] = jnp.zeros_like(l_ref)

    def update(logits):
        # logits: (L, TV) in the NATIVE dtype (no full-tile f32 upcast).
        tile_max = jnp.max(logits, axis=-1, keepdims=True).astype(jnp.float32)
        m_old = m_ref[...]
        m_new = jnp.maximum(m_old, tile_max)
        # Upcast only inside the exp argument; accumulators stay f32.
        p = jnp.exp(logits.astype(jnp.float32) - m_new)
        l_ref[...] = (l_ref[...] * jnp.exp(m_old - m_new)
                      + jnp.sum(p, axis=-1, keepdims=True))
        m_ref[...] = m_new

    if ragged:
        # Only the last vocab tile overhangs V; mask it there, pay nothing on
        # the earlier (aligned) tiles.
        @pl.when(v < nv - 1)
        def _():
            update(scores_ref[0])

        @pl.when(v == nv - 1)
        def _():
            logits = scores_ref[0]
            L, TV = logits.shape
            lane = jax.lax.broadcasted_iota(jnp.int32, (L, TV), 1)
            remaining = v_total - v * tv
            logits = jnp.where(lane < remaining, logits, -jnp.inf)
            update(logits)
    else:
        update(scores_ref[0])

    @pl.when(v == nv - 1)
    def _():
        lse_ref[...] = (m_ref[...] + jnp.log(l_ref[...]))[None]  # (1, L, 1)


def reward_criterion(scores, seq, reward, pad_token_id, reduction="mean",
                     vocab_tile=None):
    """scores: (N, L, V) float (native dtype, e.g. bf16 or f32);
    seq: (N, L) int; reward: (N, L) float."""
    N, L, V = scores.shape
    seq = seq.astype(jnp.int32)
    itemsize = jnp.dtype(scores.dtype).itemsize

    # ---- vocab tile size: ~4 MiB of native-dtype logits per (1, L, TV) tile.
    tile_bytes = 4 * 1024 * 1024
    cap = max(128, (tile_bytes // max(L * itemsize, 1)) // 128 * 128)
    if vocab_tile is not None:
        tv = int(vocab_tile)
        assert tv % 128 == 0 or tv == V, "vocab_tile must be 128-aligned or V"
    elif V <= cap:
        tv = V                       # single full-width tile (no tail mask)
    else:
        tv = cap                     # 128-aligned streamed tiles
    nv = pl.cdiv(V, tv)
    ragged = (V % tv) != 0           # last tile overhangs -> mask in-kernel

    kernel = functools.partial(_row_lse_kernel, ragged=ragged, v_total=V, tv=tv)

    cost = pl.CostEstimate(
        flops=5 * N * L * V,
        transcendentals=N * L * V,
        bytes_accessed=N * L * V * itemsize + N * L * 4,
    )

    lse = pl.pallas_call(
        kernel,
        out_shape=jax.ShapeDtypeStruct((N, L, 1), jnp.float32),
        grid_spec=pltpu.PrefetchScalarGridSpec(
            num_scalar_prefetch=0,
            grid=(N, nv),
            in_specs=[
                # logits streamed in their native dtype; no wrapper-side pad.
                pl.BlockSpec((1, L, tv), lambda i, v: (i, 0, v)),
            ],
            out_specs=pl.BlockSpec((1, L, 1), lambda i, v: (i, 0, 0)),
            scratch_shapes=[
                pltpu.VMEM((L, 1), jnp.float32),   # running max
                pltpu.VMEM((L, 1), jnp.float32),   # running exp-sum
            ],
        ),
        compiler_params=pltpu.CompilerParams(
            dimension_semantics=("parallel", "arbitrary"),
            vmem_limit_bytes=48 * 1024 * 1024),
        cost_estimate=cost,
    )(scores)[:, :, 0]                              # (N, L) f32

    # ---- tiny epilogue in plain JAX (N*L elements, negligible traffic) ----
    # Target-token raw logit gathered once, outside the streamed vocab loop.
    tok = jnp.take_along_axis(scores, seq[..., None], axis=2)[..., 0]
    tok_logp = tok.astype(jnp.float32) - lse
    is_pad = seq == pad_token_id
    tok_logp = jnp.where(is_pad, 0.0, tok_logp)
    mask = jnp.logical_and(jnp.logical_not(is_pad), seq > 0).astype(jnp.float32)
    out = -tok_logp * reward.astype(jnp.float32) * mask
    if reduction == "none":
        return out.sum(axis=1) / mask.sum(axis=1)
    return jnp.sum(out) / jnp.sum(mask)


def _reference(scores, seq, reward, pad_token_id, reduction="mean"):
    # pure-JAX reference mirroring the PyTorch forward
    logp = jax.nn.log_softmax(scores.astype(jnp.float32), axis=2)
    tok = jnp.take_along_axis(logp, seq[..., None], axis=2)[..., 0]
    tok = jnp.where(seq == pad_token_id, 0.0, tok)
    seq2 = jnp.where(seq == pad_token_id, -100, seq)
    mask = (seq2 > 0).astype(jnp.float32)
    out = -tok * reward.astype(jnp.float32) * mask
    if reduction == "none":
        return out.sum(1) / mask.sum(1)
    return out.sum() / mask.sum()


if __name__ == "__main__":
    N, L, V = 2, 8, 384
    pad_token_id = 3

    key = jax.random.PRNGKey(0)
    k1, k2, k3 = jax.random.split(key, 3)

    # "scores" in the PyTorch module is a list of L tensors of shape (N, V);
    # here we synthesize the already-stacked (N, L, V) logits.
    scores = jax.random.normal(k1, (N, L, V), dtype=jnp.float32)
    seq = jax.random.randint(k2, (N, L), 0, V, dtype=jnp.int32)
    seq = seq.at[0, L - 1].set(pad_token_id).at[1, L - 2].set(pad_token_id)
    reward = jax.random.normal(k3, (N, L), dtype=jnp.float32)

    ref_mean = _reference(scores, seq, reward, pad_token_id, "mean")
    ref_none = _reference(scores, seq, reward, pad_token_id, "none")

    # 1) single full-width vocab tile (TV == V)
    out_mean = reward_criterion(scores, seq, reward, pad_token_id, "mean")
    out_none = reward_criterion(scores, seq, reward, pad_token_id, "none")
    # 2) multi-tile, evenly divided (online logsumexp across 3 tiles)
    out_mean_t = reward_criterion(scores, seq, reward, pad_token_id, "mean",
                                  vocab_tile=128)
    out_none_t = reward_criterion(scores, seq, reward, pad_token_id, "none",
                                  vocab_tile=128)
    # 3) ragged last tile (384 % 256 != 0) -> exercises the in-kernel tail mask
    out_mean_r = reward_criterion(scores, seq, reward, pad_token_id, "mean",
                                  vocab_tile=256)
    out_none_r = reward_criterion(scores, seq, reward, pad_token_id, "none",
                                  vocab_tile=256)
    # 4) bf16 logits path (no full-tile upcast inside the kernel)
    scores_bf = scores.astype(jnp.bfloat16)
    out_bf = reward_criterion(scores_bf, seq, reward, pad_token_id, "mean")
    ref_bf = _reference(scores_bf, seq, reward, pad_token_id, "mean")

    jax.block_until_ready((out_mean, out_none, out_mean_t, out_none_t,
                           out_mean_r, out_none_r, out_bf))

    np.testing.assert_allclose(np.asarray(out_mean), np.asarray(ref_mean),
                               rtol=1e-5, atol=1e-5)
    np.testing.assert_allclose(np.asarray(out_none), np.asarray(ref_none),
                               rtol=1e-5, atol=1e-5)
    np.testing.assert_allclose(np.asarray(out_mean_t), np.asarray(ref_mean),
                               rtol=1e-5, atol=1e-5)
    np.testing.assert_allclose(np.asarray(out_none_t), np.asarray(ref_none),
                               rtol=1e-5, atol=1e-5)
    np.testing.assert_allclose(np.asarray(out_mean_r), np.asarray(ref_mean),
                               rtol=1e-5, atol=1e-5)
    np.testing.assert_allclose(np.asarray(out_none_r), np.asarray(ref_none),
                               rtol=1e-5, atol=1e-5)
    np.testing.assert_allclose(np.asarray(out_bf), np.asarray(ref_bf),
                               rtol=1e-4, atol=1e-4)
    print("KERNEL_OK")
</pallas_src>

<mosaic_0001>
module attributes {stable_mosaic.version = 11 : i64} {
  func.func @_row_lse_kernel(%arg0: i32, %arg1: i32, %arg2: memref<1x8x384xf32, #tpu.memory_space<vmem>>, %arg3: memref<1x8x1xf32, #tpu.memory_space<vmem>>, %arg4: memref<8x1xf32, #tpu.memory_space<vmem>>, %arg5: memref<8x1xf32, #tpu.memory_space<vmem>>) attributes {dimension_semantics = [#tpu.dimension_semantics<parallel>, #tpu.dimension_semantics<arbitrary>], iteration_bounds = array<i64: 2, 1>, scalar_prefetch = 0 : i64, scratch_operands = 2 : i64, tpu.core_type = #tpu.core_type<tc>, window_params = [{transform_indices = @transform_0, window_bounds = array<i64: 1, 8, 384>}, {transform_indices = @transform_1, window_bounds = array<i64: 1, 8, 1>}]} {
    %c0_i32 = arith.constant 0 : i32
    %0 = arith.cmpi eq, %arg1, %c0_i32 : i32
    %1 = arith.extui %0 : i1 to i32
    %c0_i32_0 = arith.constant 0 : i32
    %2 = arith.cmpi ne, %1, %c0_i32_0 : i32
    scf.if %2 {
      %cst_14 = arith.constant 0xFF800000 : f32
      %24 = vector.broadcast %cst_14 : f32 to vector<8x1xf32>
      %c0_15 = arith.constant 0 : index
      %c0_16 = arith.constant 0 : index
      %25 = vector.load %arg4[%c0_15, %c0_16] : memref<8x1xf32, #tpu.memory_space<vmem>>, vector<8x1xf32>
      tpu.vector_store %arg4[%c0_15, %c0_16], %24 {strides = array<i32>} : memref<8x1xf32, #tpu.memory_space<vmem>>, vector<8x1xf32>,
      %cst_17 = arith.constant 0.000000e+00 : f32
      %26 = vector.broadcast %cst_17 : f32 to vector<8x1xf32>
      %c0_18 = arith.constant 0 : index
      %c0_19 = arith.constant 0 : index
      %27 = vector.load %arg5[%c0_18, %c0_19] : memref<8x1xf32, #tpu.memory_space<vmem>>, vector<8x1xf32>
      tpu.vector_store %arg5[%c0_18, %c0_19], %26 {strides = array<i32>} : memref<8x1xf32, #tpu.memory_space<vmem>>, vector<8x1xf32>,
    } else {
    }
    %c0 = arith.constant 0 : index
    %c0_1 = arith.constant 0 : index
    %c0_2 = arith.constant 0 : index
    %3 = vector.load %arg2[%c0, %c0_1, %c0_2] : memref<1x8x384xf32, #tpu.memory_space<vmem>>, vector<1x8x384xf32>
    %4 = vector.shape_cast %3 : vector<1x8x384xf32> to vector<8x384xf32>
    %cst = arith.constant dense<0xFF800000> : vector<8xf32>
    %5 = vector.multi_reduction <maximumf>, %4, %cst [1] : vector<8x384xf32> to vector<8xf32>
    %6 = vector.shape_cast %5 : vector<8xf32> to vector<8x1xf32>
    %c0_3 = arith.constant 0 : index
    %c0_4 = arith.constant 0 : index
    %7 = vector.load %arg4[%c0_3, %c0_4] : memref<8x1xf32, #tpu.memory_space<vmem>>, vector<8x1xf32>
    %8 = arith.maximumf %7, %6 : vector<8x1xf32>
    %9 = vector.broadcast %8 : vector<8x1xf32> to vector<8x384xf32>
    %10 = arith.subf %4, %9 : vector<8x384xf32>
    %11 = math.exp %10 : vector<8x384xf32>
    %c0_5 = arith.constant 0 : index
    %c0_6 = arith.constant 0 : index
    %12 = vector.load %arg5[%c0_5, %c0_6] : memref<8x1xf32, #tpu.memory_space<vmem>>, vector<8x1xf32>
    %13 = arith.subf %7, %8 : vector<8x1xf32>
    %14 = math.exp %13 : vector<8x1xf32>
    %15 = arith.mulf %12, %14 : vector<8x1xf32>
    %cst_7 = arith.constant dense<0.000000e+00> : vector<8xf32>
    %16 = vector.multi_reduction <add>, %11, %cst_7 [1] : vector<8x384xf32> to vector<8xf32>
    %17 = vector.shape_cast %16 : vector<8xf32> to vector<8x1xf32>
    %18 = arith.addf %15, %17 : vector<8x1xf32>
    %c0_8 = arith.constant 0 : index
    %c0_9 = arith.constant 0 : index
    %19 = vector.load %arg5[%c0_8, %c0_9] : memref<8x1xf32, #tpu.memory_space<vmem>>, vector<8x1xf32>
    tpu.vector_store %arg5[%c0_8, %c0_9], %18 {strides = array<i32>} : memref<8x1xf32, #tpu.memory_space<vmem>>, vector<8x1xf32>,
    %c0_10 = arith.constant 0 : index
    %c0_11 = arith.constant 0 : index
    %20 = vector.load %arg4[%c0_10, %c0_11] : memref<8x1xf32, #tpu.memory_space<vmem>>, vector<8x1xf32>
    tpu.vector_store %arg4[%c0_10, %c0_11], %8 {strides = array<i32>} : memref<8x1xf32, #tpu.memory_space<vmem>>, vector<8x1xf32>,
    %c0_i32_12 = arith.constant 0 : i32
    %21 = arith.cmpi eq, %arg1, %c0_i32_12 : i32
    %22 = arith.extui %21 : i1 to i32
    %c0_i32_13 = arith.constant 0 : i32
    %23 = arith.cmpi ne, %22, %c0_i32_13 : i32
    scf.if %23 {
      %c0_14 = arith.constant 0 : index
      %c0_15 = arith.constant 0 : index
      %24 = vector.load %arg4[%c0_14, %c0_15] : memref<8x1xf32, #tpu.memory_space<vmem>>, vector<8x1xf32>
      %c0_16 = arith.constant 0 : index
      %c0_17 = arith.constant 0 : index
      %25 = vector.load %arg5[%c0_16, %c0_17] : memref<8x1xf32, #tpu.memory_space<vmem>>, vector<8x1xf32>
      %26 = math.log %25 : vector<8x1xf32>
      %27 = arith.addf %24, %26 : vector<8x1xf32>
      %28 = vector.shape_cast %27 : vector<8x1xf32> to vector<1x8x1xf32>
      %c0_18 = arith.constant 0 : index
      %c0_19 = arith.constant 0 : index
      %c0_20 = arith.constant 0 : index
      %29 = vector.load %arg3[%c0_18, %c0_19, %c0_20] : memref<1x8x1xf32, #tpu.memory_space<vmem>>, vector<1x8x1xf32>
      tpu.vector_store %arg3[%c0_18, %c0_19, %c0_20], %28 {strides = array<i32>} : memref<1x8x1xf32, #tpu.memory_space<vmem>>, vector<1x8x1xf32>,
    } else {
    }
    return
  }
  func.func @transform_0(%arg0: i32, %arg1: i32) -> (i32, i32, i32) {
    %c0_i32 = arith.constant 0 : i32
    %c0_i32_0 = arith.constant 0 : i32
    return %arg0, %c0_i32, %arg1 : i32, i32, i32
  }
  func.func @transform_1(%arg0: i32, %arg1: i32) -> (i32, i32, i32) {
    %c0_i32 = arith.constant 0 : i32
    %c0_i32_0 = arith.constant 0 : i32
    %c0_i32_1 = arith.constant 0 : i32
    return %arg0, %c0_i32, %c0_i32_0 : i32, i32, i32
  }
}

</mosaic_0001>

<llo_original>
// kernel: tpu_custom_call.1
$region0: #{tpu_custom_call.1}
  #allocation0 [shape = 'u32[]', space=smem, size = 0x4, offset = 0x4, fixed_abs, tag = 'smem constant byte address 0x4 - core index']
  #allocation1 [shape = 'u32[144,128]{1,0:T(1,128)}', space=vmem, size = 0x12000, scoped, tag = 'internal scratch']
  #allocation2 [shape = 'f32[8,1]{1,0:T(8,128)}', space=vmem, size = 0x1000, scoped, tag = 'scratch operand']
  #allocation3 [shape = 'f32[8,1]{1,0:T(8,128)}', space=vmem, size = 0x1000, scoped, tag = 'scratch operand']
  %s0 = inlined_call_operand.hbm [shape: f32[2,8,384], index: 0, kind: input, shape index: {}]
  %s1 = inlined_call_operand.vmem [shape: f32[2,8,1], index: 1, kind: output, shape index: {}]
  %s2 = sld [smem:[#allocation0]]
  $region49: #{tpu_custom_call.1} parent=0
    _
  %s4 = ssub.s32 1, %s2
  %s5 = scalar_select 0, %s4, %s2
  $region1: #{tpu_custom_call.1} parent=0
    #allocation4 [shape = 'u8[24576]{0}', space=vmem, size = 0x6000, scoped, tag = 'input window, operand 0']
    #allocation5 [shape = 's32[2]{0}', space=sflag, size = 0x8, scoped, tag = 'scoped memory for tpu_custom_call.1']
    %6 = vsyncpa [#allocation5], 0
    %s7 = scalar_lea.sflag [#allocation5], 1
    %8 = vsyncpa %s7, 0
    loop: start=0, step=1, limit=4
    $region2: #{tpu_custom_call.1} parent=1 // loop_pre_header
      _
    $region3: #{tpu_custom_call.1} parent=1 // loop_header
      %s10 = sphi 0, %s14
      %p11 = scmp.ge.s32.totalorder %s10, 4
      %s17 = sphi 0, %s29
      %s18 = sphi 0, %s25
      %s19 = sphi 0, %s17
      %s20 = sphi 0, %s18
      %s21 = sphi 0, %s19
      %s22 = sphi 0, %s20
      %s34 = sphi 0, %s36
      %s37 = sphi 0, %s34
      %s38 = sphi 0, %s37
      %s54 = sphi 0, %s38
      %s60 = sphi 0, %s62
      %s63 = sphi 0, %s60
      %s64 = sphi 0, %s63
      %s80 = sphi 0, %s64
    $region4: #{tpu_custom_call.1} parent=1 // loop_header_branch
      %13 = sbr.rel (%p11) target = $region8
    $region5: #{tpu_custom_call.1} parent=1 // loop_body
      %s15 = ssub.s32 %s10, 1
      %s16 = ssub.s32 %s10, 2
      %s23 = sadd.s32 1, %s18
      %p24 = scmp.ge.s32.totalorder %s23, 1
      %s25 = scalar_select %p24, 0, %s23
      %s26 = sadd.s32 1, %s17
      %s27 = scalar_select %p24, %s26, %s17
      %p28 = scmp.ge.s32.totalorder %s27, 2
      %s29 = scalar_select %p28, 0, %s27
      %s30 = ssub.s32 %s17, %s29
      %s31 = ssub.s32 %s18, %s25
      %s32 = sor.u32 %s30, %s31
      %p33 = scmp.eq.s32.totalorder %s32, 0
      %s35 = sadd.s32 %s34, 1
      %s36 = scalar_select %p33, %s34, %s35
      %p39 = pneg %p33
      %p40 = scmp.eq.s32.totalorder %s10, 1
      %p41 = por %p39, %p40
      %p42 = scmp.ne.s32.totalorder %s34, %s37
      %p43 = scmp.eq.s32.totalorder %s10, 0
      %p44 = por %p42, %p43
      %p45 = scmp.ne.s32.totalorder %s34, %s37
      %p46 = scmp.eq.s32.totalorder %s15, 1
      %p47 = por %p45, %p46
      %p48 = scmp.ne.s32.totalorder %s37, %s38
      %p49 = scmp.eq.s32.totalorder %s15, 0
      %p50 = por %p48, %p49
      %p51 = scmp.ne.s32.totalorder %s37, %s38
      %p52 = scmp.eq.s32.totalorder %s16, 1
      %p53 = por %p51, %p52
      %p55 = scmp.ne.s32.totalorder %s38, %s54
      %p56 = scmp.eq.s32.totalorder %s16, 0
      %p57 = por %p55, %p56
      %s58 = ssub.s32 %s17, %s29
      %p59 = scmp.eq.s32.totalorder %s58, 0
      %s61 = sadd.s32 %s60, 1
      %s62 = scalar_select %p59, %s60, %s61
      %p65 = pneg %p59
      %p66 = scmp.eq.s32.totalorder %s10, 1
      %p67 = por %p65, %p66
      %p68 = scmp.ne.s32.totalorder %s60, %s63
      %p69 = scmp.eq.s32.totalorder %s10, 0
      %p70 = por %p68, %p69
      %p71 = scmp.ne.s32.totalorder %s60, %s63
      %p72 = scmp.eq.s32.totalorder %s15, 1
      %p73 = por %p71, %p72
      %p74 = scmp.ne.s32.totalorder %s63, %s64
      %p75 = scmp.eq.s32.totalorder %s15, 0
      %p76 = por %p74, %p75
      %p77 = scmp.ne.s32.totalorder %s63, %s64
      %p78 = scmp.eq.s32.totalorder %s16, 1
      %p79 = por %p77, %p78
      %p81 = scmp.ne.s32.totalorder %s64, %s80
      %p82 = scmp.eq.s32.totalorder %s16, 0
      %p83 = por %p81, %p82
      %p84 = scmp.le.s32.totalorder 1, %s10
      %p85 = scmp.lt.s32.totalorder %s10, 3
      %p86 = pnand %p84, %p85
      %p87 = pneg %p86
      // Predicated region
      $region9: #{tpu_custom_call.1} parent=5 // pred_check
        _
      $region10: #{tpu_custom_call.1} parent=5 // pred_check_branch
        %89 = sbr.rel (%p86) target = $region12
      $region11: #{tpu_custom_call.1} parent=5 // pred_region
        %s90 = ssub.s32 %s10, 1
      $region12: #{tpu_custom_call.1} parent=5 // pred_fallthru
        _
      %p91 = scmp.lt.s32.totalorder %s10, 2
      // Predicated region
      $region13: #{tpu_custom_call.1} parent=5 // pred_check
        %p92 = pneg %p91
      $region14: #{tpu_custom_call.1} parent=5 // pred_check_branch
        %94 = sbr.rel (%p92) target = $region16
      $region15: #{tpu_custom_call.1} parent=5 // pred_region
        // Predicated region
        $region17: #{tpu_custom_call.1} parent=15 // pred_check
          %p95 = pneg %p44
        $region18: #{tpu_custom_call.1} parent=15 // pred_check_branch
          %97 = sbr.rel (%p95) target = $region20
        $region19: #{tpu_custom_call.1} parent=15 // pred_region
          %s98 = sand.u32 %s34, 1
          %s99 = scalar_lea.sflag [#allocation5], %s98
          %s100 = sand.u32 %s34, 1
          %s101 = smul.addr %s100, 24
          %s102 = scalar_lea.vmem [#allocation4], %s101
          %s103 = smul.u32 3, %s18
          %s105 = ssub.s32 384, 384
          %106 = vsyncadd %s99, %s105
          %s107 = smul.addr %s17, 3
          %s108 = sadd.s32 %s103, %s107
          %s109 = smul.addr %s108, 128
          %s110 = scalar_lea.hbm %s0, %s109
          %s112 = sshll.u32 %s102, 4
          %s113 = int_to_ptr.vmem [resolvable:$true] %s112
          %115 = dma.hbm_to_vmem [thread:$0]  %s110, 384, %s113, %s99
        $region20: #{tpu_custom_call.1} parent=15 // pred_fallthru
          _
      $region16: #{tpu_custom_call.1} parent=5 // pred_fallthru
        _
      %p116 = scmp.le.s32.totalorder 1, %s10
      %p117 = scmp.lt.s32.totalorder %s10, 3
      %p118 = pnand %p116, %p117
      %p119 = pneg %p118
      // Predicated region
      $region21: #{tpu_custom_call.1} parent=5 // pred_check
        _
      $region22: #{tpu_custom_call.1} parent=5 // pred_check_branch
        %121 = sbr.rel (%p118) target = $region24
      $region23: #{tpu_custom_call.1} parent=5 // pred_region
        %s122 = ssub.s32 %s10, 1
        %s123 = sand.u32 %s37, 1
        %s124 = scalar_lea.sflag [#allocation5], %s123
        %s125 = sand.u32 %s37, 1
        %s126 = smul.addr %s125, 24
        %s127 = scalar_lea.vmem [#allocation4], %s126
        // Predicated region
        $region25: #{tpu_custom_call.1} parent=23 // pred_check
          %p128 = pneg %p50
        $region26: #{tpu_custom_call.1} parent=23 // pred_check_branch
          %130 = sbr.rel (%p128) target = $region28
        $region27: #{tpu_custom_call.1} parent=23 // pred_region
          %131 = dma.done %s124, 384
        $region28: #{tpu_custom_call.1} parent=23 // pred_fallthru
          _
        %s132 = sand.u32 %s37, 1
        %s133 = scalar_lea.sflag [#allocation5], %s132
        %s134 = sand.u32 %s37, 1
        %s135 = smul.addr %s134, 24
        %s136 = scalar_lea.vmem [#allocation4], %s135
        %p137 = pneg %p50
        %p138 = pneg %p47
        %p139 = pneg %p76
        %p140 = pneg %p73
        %p141 = scmp.lt.s32.totalorder %s19, 1
        %s142 = scalar_select %p141, %s19, 1
        %s143 = smul.addr %s142, 8
        %s144 = scalar_lea.vmem %s1, %s143
        %s145 = smul.u32 3, %s20
        %p146 = scmp.lt.s32.totalorder %s19, 1
        %s147 = scalar_select %p146, %s19, 1
        %s148 = smul.addr %s147, 8
        %s149 = scalar_lea.vmem %s1, %s148
        %p150 = scmp.eq.s32.totalorder %s20, 0
        // Predicated region
        $region29: #{tpu_custom_call.1} parent=23 // pred_check
          %p151 = pneg %p150
        $region30: #{tpu_custom_call.1} parent=23 // pred_check_branch
          %153 = sbr.rel (%p151) target = $region32
        $region31: #{tpu_custom_call.1} parent=23 // pred_region
          %vm154 = vcmask 7168
          %155 = vst.msk [vmem:[#allocation2] sm:$0xff] %vm154, -inf
          %156 = vst.msk [vmem:[#allocation3] sm:$0xff] %vm154, 0.0
        $region32: #{tpu_custom_call.1} parent=23 // pred_fallthru
          _
        %v157 = vld [vmem:[%s127] sm:$0xff]
        %v158 = vld [vmem:[%s127 + $0x8] sm:$0xff]
        %v159 = vld [vmem:[%s127 + $0x10] sm:$0xff]
        %v160 = vmax.f32 %v157, %v158
        %v161 = vmax.f32 %v160, %v159
        %162 = vmax.xlane.f32.xlu0 %v161
        %v163 = vpop.xlane.xlu0 %162
        %v164 = vld [vmem:[#allocation2] sm:$0xff]
        %v165 = vmax.f32 %v164, %v163
        %167 = vset.pattern.permute.xlu0 0
        %168 = vperm.xlu0 %167, %v165
        %v169 = vpop.permute.xlu0 %168
        %v171 = vsub.f32 %v157, %v169
        %v172 = vsub.f32 %v158, %v169
        %v173 = vsub.f32 %v159, %v169
        %v174 = vmul.f32 %v171, 1.442695
        %v175 = vpow.pop %v174
        %v176 = vmul.f32 %v172, 1.442695
        %v177 = vpow.pop %v176
        %v178 = vmul.f32 %v173, 1.442695
        %v179 = vpow.pop %v178
        %v180 = vld [vmem:[#allocation3] sm:$0xff]
        %v181 = vsub.f32 %v164, %v165
        %v182 = vmul.f32 %v181, 1.442695
        %v183 = vpow.pop %v182
        %v184 = vmul.f32 %v180, %v183
        %v185 = vadd.f32 %v175, %v177
        %v186 = vadd.f32 %v185, %v179
        %187 = vadd.xlane.f32.xlu0 %v186
        %v188 = vpop.xlane.xlu0 %187
        %v189 = vadd.f32 %v184, %v188
        %vm190 = vcmask 7168
        %191 = vst.msk [vmem:[#allocation3] sm:$0xff] %vm190, %v189
        %192 = vst.msk [vmem:[#allocation2] sm:$0xff] %vm190, %v165
        // Predicated region
        $region33: #{tpu_custom_call.1} parent=23 // pred_check
          %p193 = pneg %p150
        $region34: #{tpu_custom_call.1} parent=23 // pred_check_branch
          %195 = sbr.rel (%p193) target = $region36
        $region35: #{tpu_custom_call.1} parent=23 // pred_region
          %v196 = vld [vmem:[#allocation2] sm:$0xff]
          %v197 = vld [vmem:[#allocation3] sm:$0xff]
          %v198 = vlog2.pop %v197
          %v199 = vmul.f32 %v198, 0.6931472
          %v200 = vadd.f32 %v196, %v199
          %201 = vst.msk [vmem:[%s149] sm:$0xff] %vm190, %v200
        $region36: #{tpu_custom_call.1} parent=23 // pred_fallthru
          _
        %p202 = scmp.lt.s32.totalorder %s19, 1
        %s203 = scalar_select %p202, %s19, 1
        %s204 = smul.addr %s203, 8
        %s205 = scalar_lea.vmem %s1, %s204
        // Predicated region
        $region37: #{tpu_custom_call.1} parent=23 // pred_check
          %p206 = pneg %p73
        $region38: #{tpu_custom_call.1} parent=23 // pred_check_branch
          %208 = sbr.rel (%p206) target = $region40
        $region39: #{tpu_custom_call.1} parent=23 // pred_region
          _
        $region40: #{tpu_custom_call.1} parent=23 // pred_fallthru
          _
      $region24: #{tpu_custom_call.1} parent=5 // pred_fallthru
        _
      %p209 = scmp.le.s32.totalorder 2, %s10
      // Predicated region
      $region41: #{tpu_custom_call.1} parent=5 // pred_check
        %p210 = pneg %p209
      $region42: #{tpu_custom_call.1} parent=5 // pred_check_branch
        %212 = sbr.rel (%p210) target = $region44
      $region43: #{tpu_custom_call.1} parent=5 // pred_region
        %s213 = ssub.s32 %s10, 2
        // Predicated region
        $region45: #{tpu_custom_call.1} parent=43 // pred_check
          %p214 = pneg %p79
        $region46: #{tpu_custom_call.1} parent=43 // pred_check_branch
          %216 = sbr.rel (%p214) target = $region48
        $region47: #{tpu_custom_call.1} parent=43 // pred_region
          %p217 = scmp.lt.s32.totalorder %s21, 1
          %s218 = scalar_select %p217, %s21, 1
          %s219 = smul.addr %s218, 8
          %s220 = scalar_lea.vmem %s1, %s219
        $region48: #{tpu_custom_call.1} parent=43 // pred_fallthru
          _
      $region44: #{tpu_custom_call.1} parent=5 // pred_fallthru
        _
    $region6: #{tpu_custom_call.1} parent=1 // loop_footer
      %s14 = sadd.s32 1, %s10
    $region7: #{tpu_custom_call.1} parent=1 // loop_footer_branch
      %9 = sbr.rel target = $region3
    $region8: #{tpu_custom_call.1} parent=1 // loop_exit
      _
    %221 = vsyncpa [#allocation5], 1
    %s222 = scalar_lea.sflag [#allocation5], 1
    %223 = vsyncpa %s222, 1

</llo_original>
